<compile_context>
chip_gen: v6e
topology: v6e:2x2x1
jax: 0.10.0
libtpu: 0.0.40
codegen_flags: <defaults>
</compile_context>

<pallas_src>
from functools import partial

import numpy as np
import jax
import jax.numpy as jnp
from jax.experimental import pallas as pl
from jax.experimental.pallas import tpu as pltpu


_VMEM_LIMIT = 48 * 1024 * 1024   # under v7x's 64 MiB; plenty of headroom on v5e/v6e


# ----------------------- Pallas kernel: LayerNorm + kv ----------------------

def _ln_linear_kernel(x_ref, g_ref, beta_ref, w_ref, o_ref):
    # Fused LayerNorm (last dim, eps=1e-5, biased var, f32 stats) + matmul
    # (no bias: kv Linear has qkv_bias=False).  Rows arrive in bf16 (halves
    # the HBM stream); statistics and normalization are computed in f32;
    # matmul operands bf16, accumulation f32, output bf16.
    x = x_ref[...].astype(jnp.float32)
    mu = jnp.mean(x, axis=-1, keepdims=True)
    var = jnp.mean(jnp.square(x - mu), axis=-1, keepdims=True)
    xn = (x - mu) * jax.lax.rsqrt(var + 1e-5)
    xn = xn * g_ref[...] + beta_ref[...]
    acc = jnp.dot(xn.astype(w_ref.dtype), w_ref[...],
                  preferred_element_type=jnp.float32)
    o_ref[...] = acc.astype(o_ref.dtype)


def layernorm_linear(x2d, gamma, beta, w_bf16, *, tile_m=1024,
                     out_dtype=jnp.bfloat16):
    """x2d: (M, C) bf16/f32, gamma/beta: (C,), w_bf16: (C, Kout) bf16 -> (M, Kout)."""
    M, C = x2d.shape
    Kout = w_bf16.shape[1]
    tm = M if M <= tile_m else tile_m            # full-extent block if small
    g2 = gamma.reshape(1, C).astype(jnp.float32)
    b2 = beta.reshape(1, C).astype(jnp.float32)
    cost = pl.CostEstimate(
        flops=2 * M * C * Kout + 10 * M * C,
        transcendentals=M,
        bytes_accessed=M * C * 2 + C * Kout * 2 + 2 * C * 4 + M * Kout * 2)
    return pl.pallas_call(
        _ln_linear_kernel,
        out_shape=jax.ShapeDtypeStruct((M, Kout), out_dtype),
        grid=(pl.cdiv(M, tm),),
        in_specs=[
            pl.BlockSpec((tm, C), lambda i: (i, 0)),
            pl.BlockSpec((1, C), lambda i: (0, 0)),
            pl.BlockSpec((1, C), lambda i: (0, 0)),
            pl.BlockSpec((C, Kout), lambda i: (0, 0)),
        ],
        out_specs=pl.BlockSpec((tm, Kout), lambda i: (i, 0)),
        compiler_params=pltpu.CompilerParams(
            dimension_semantics=("parallel",),
            vmem_limit_bytes=_VMEM_LIMIT),
        cost_estimate=cost,
    )(x2d.astype(jnp.bfloat16), g2, b2, w_bf16)


# -------------- Pallas kernel: fused q-proj + attention + proj --------------

def _fused_attn_kernel(x_ref, kt_ref, v_ref, qw_ref, pw_ref, pb_ref, bias_ref,
                       o_ref, *, num_heads, head_dim, scale, apply_mask):
    # Per (batch, N-tile) step:
    #   x_ref : (tn, C)      bf16   query-row tile
    #   kt_ref: (C, P_pad)   bf16   K pre-transposed -> sublane head slices
    #   v_ref : (P_pad, C)   bf16
    #   bias  : (1, P_pad)   f32    0 on valid pooled tokens, -1e30 on padding
    # q projection (qkv_bias=False); softmax scale folded into q; single cast.
    q = jnp.dot(x_ref[...], qw_ref[...],
                preferred_element_type=jnp.float32) * scale
    q = q.astype(jnp.bfloat16)                               # (tn, C)

    kt = kt_ref[...]                                         # (C, P_pad)
    v = v_ref[...]                                           # (P_pad, C)
    bias = bias_ref[...]                                     # (1, P_pad)

    heads = []
    for h in range(num_heads):
        lo = h * head_dim
        hi = lo + head_dim
        # K slice is a sublane slice -> plain NN matmul with lane-dense RHS.
        s = jnp.dot(q[:, lo:hi], kt[lo:hi, :],
                    preferred_element_type=jnp.float32)      # (tn, P_pad)
        if apply_mask:
            s = s + bias                                      # mask pad columns
        m = jnp.max(s, axis=-1, keepdims=True)
        p = jnp.exp(s - m)
        l = jnp.sum(p, axis=-1, keepdims=True)
        acc = jnp.dot(p.astype(jnp.bfloat16), v[:, lo:hi],
                      preferred_element_type=jnp.float32)     # (tn, d)
        # normalize after the PV matmul via EUP reciprocal (frees VPU slots)
        heads.append(acc * pl.reciprocal(l, approx=True))

    attn = jnp.concatenate(heads, axis=-1).astype(jnp.bfloat16)   # (tn, C)
    # output projection (+bias); attn/proj dropouts are identity at p=0.0
    o_ref[...] = (jnp.dot(attn, pw_ref[...],
                          preferred_element_type=jnp.float32) + pb_ref[...])


def fused_attention(x_bf16, k_t, v, q_w_bf16, proj_w_bf16, proj_b,
                    *, num_heads, scale, valid_p, tile_n=256):
    """x_bf16: (B, N, C) bf16, k_t: (B, C, P_pad) bf16, v: (B, P_pad, C) bf16."""
    B, N, C = x_bf16.shape
    P_pad = v.shape[1]
    hd = C // num_heads
    tn = N if N <= tile_n else tile_n
    n_tiles = pl.cdiv(N, tn)
    pb2 = proj_b.reshape(1, C).astype(jnp.float32)

    # Additive pad-mask row: 0 on valid pooled tokens, -1e30 on padding.
    bias = jnp.where(jnp.arange(P_pad) < valid_p, 0.0, -1e30)
    bias = bias.reshape(1, P_pad).astype(jnp.float32)

    cost = pl.CostEstimate(
        flops=4 * B * N * C * C + 4 * B * N * P_pad * C,
        transcendentals=B * num_heads * N * (P_pad + 1),
        bytes_accessed=(B * N * C * 2 + 2 * B * P_pad * C * 2
                        + 2 * C * C * 2 + C * 4 + P_pad * 4 + B * N * C * 4))

    return pl.pallas_call(
        partial(_fused_attn_kernel, num_heads=num_heads, head_dim=hd,
                scale=scale, apply_mask=valid_p < P_pad),
        out_shape=jax.ShapeDtypeStruct((B, N, C), jnp.float32),
        grid=(B, n_tiles),
        in_specs=[
            pl.BlockSpec((None, tn, C), lambda b, n: (b, n, 0)),
            pl.BlockSpec((None, C, P_pad), lambda b, n: (b, 0, 0)),
            pl.BlockSpec((None, P_pad, C), lambda b, n: (b, 0, 0)),
            pl.BlockSpec((C, C), lambda b, n: (0, 0)),
            pl.BlockSpec((C, C), lambda b, n: (0, 0)),
            pl.BlockSpec((1, C), lambda b, n: (0, 0)),
            pl.BlockSpec((1, P_pad), lambda b, n: (0, 0)),
        ],
        out_specs=pl.BlockSpec((None, tn, C), lambda b, n: (b, n, 0)),
        compiler_params=pltpu.CompilerParams(
            dimension_semantics=("parallel", "parallel"),
            vmem_limit_bytes=_VMEM_LIMIT),
        cost_estimate=cost,
    )(x_bf16, k_t, v, q_w_bf16, proj_w_bf16, pb2, bias)


# ------------------------------ JAX glue ops ---------------------------------
# TODO(synk): adaptive_avg_pool2d + tiny depthwise 3x3 d_convs stay as XLA
# einsum/conv ops (pooled tensors are a few KB; a Pallas kernel buys nothing).

def _adaptive_pool_matrix(in_size, out_size):
    """Exact torch adaptive_avg_pool bin edges as an (out, in) averaging matrix."""
    m = np.zeros((out_size, in_size), np.float32)
    for i in range(out_size):
        s = (i * in_size) // out_size
        e = -((-(i + 1) * in_size) // out_size)  # ceil((i+1)*in/out)
        m[i, s:e] = 1.0 / (e - s)
    return jnp.asarray(m)


def adaptive_avg_pool_nhwc(x_bhwc, out_h, out_w):
    H, W = x_bhwc.shape[1], x_bhwc.shape[2]
    mh = _adaptive_pool_matrix(H, out_h)
    mw = _adaptive_pool_matrix(W, out_w)
    return jnp.einsum("oh,bhwc,pw->bopc", mh, x_bhwc, mw)


def depthwise_conv3x3_nhwc(x_bhwc, w_oihw, b):
    # w_oihw: (C, 1, 3, 3), b: (C,)  -- same math as the PyTorch NCHW conv.
    C = x_bhwc.shape[-1]
    w_hwio = jnp.transpose(w_oihw, (2, 3, 1, 0))  # (3, 3, 1, C)
    out = jax.lax.conv_general_dilated(
        x_bhwc, w_hwio,
        window_strides=(1, 1),
        padding=((1, 1), (1, 1)),
        dimension_numbers=("NHWC", "HWIO", "NHWC"),
        feature_group_count=C,
    )
    return out + b.reshape(1, 1, 1, C)


# --------------------------- PoolingAttention fwd ---------------------------

def pooling_attention_forward(x, H, W, params, num_heads, pool_ratios):
    """x: (B, N, C) with N == H * W. Returns (B, N, C)."""
    B, N, C = x.shape
    hd = C // num_heads
    scale = hd ** (-0.5)

    x = x.astype(jnp.float32)
    q_w_bf16 = params["q_w"].astype(jnp.bfloat16)
    kv_w_bf16 = params["kv_w"].astype(jnp.bfloat16)
    proj_w_bf16 = params["proj_w"].astype(jnp.bfloat16)

    # Pooling pyramid, built channel-last -> no NCHW/NHWC relayouts of (B,N,C)
    x_bhwc = x.reshape(B, H, W, C)
    pools = []
    for ratio, (cw, cb) in zip(pool_ratios, params["dconvs"]):
        ph, pw = round(H / ratio), round(W / ratio)
        pooled = adaptive_avg_pool_nhwc(x_bhwc, ph, pw)
        pooled = pooled + depthwise_conv3x3_nhwc(pooled, cw, cb)
        pools.append(pooled.reshape(B, ph * pw, C))
    pools = jnp.concatenate(pools, axis=1)               # (B, P, C)
    P = pools.shape[1]

    # Pad pooled tokens up to a multiple of 128 lanes; padded score columns
    # are masked with a -1e30 additive bias inside the attention kernel.
    P_pad = ((P + 127) // 128) * 128
    if P_pad != P:
        pools = jnp.pad(pools, ((0, 0), (0, P_pad - P), (0, 0)))

    # Fused LayerNorm + kv projection (row-tiled, bf16 in/out)
    kv = layernorm_linear(pools.reshape(B * P_pad, C).astype(jnp.bfloat16),
                          params["ln_g"], params["ln_b"], kv_w_bf16)
    kv = kv.reshape(B, P_pad, 2 * C)
    # One-time XLA transpose of K so per-head slices inside the kernel are
    # sublane slices (no per-head relayout copies).
    k_t = jnp.swapaxes(kv[:, :, :C], 1, 2)                # (B, C, P_pad) bf16
    v = kv[:, :, C:]                                      # (B, P_pad, C) bf16

    # Fused q-projection + multi-head attention + output projection,
    # tiled over (batch, query rows).
    out = fused_attention(x.astype(jnp.bfloat16), k_t, v,
                          q_w_bf16, proj_w_bf16, params["proj_b"],
                          num_heads=num_heads, scale=scale, valid_p=P)
    return out


# --------------------------------- main --------------------------------------

def make_params(key, dim, pool_ratios):
    keys = jax.random.split(key, 8 + 2 * len(pool_ratios))
    it = iter(keys)
    std = 0.02
    params = {
        "q_w": std * jax.random.normal(next(it), (dim, dim), jnp.float32),
        "kv_w": std * jax.random.normal(next(it), (dim, 2 * dim), jnp.float32),
        "proj_w": std * jax.random.normal(next(it), (dim, dim), jnp.float32),
        "proj_b": std * jax.random.normal(next(it), (dim,), jnp.float32),
        "ln_g": jnp.ones((dim,), jnp.float32),
        "ln_b": jnp.zeros((dim,), jnp.float32),
        "dconvs": [],
    }
    for _ in pool_ratios:
        cw = std * jax.random.normal(next(it), (dim, 1, 3, 3), jnp.float32)
        cb = std * jax.random.normal(next(it), (dim,), jnp.float32)
        params["dconvs"].append((cw, cb))
    return params


if __name__ == "__main__":
    B, H, W = 2, 8, 8
    dim = 32
    num_heads = 2
    pool_ratios = [1, 2, 3, 6]
    N = H * W

    key = jax.random.PRNGKey(0)
    kx, kp = jax.random.split(key)
    x = jax.random.normal(kx, (B, N, dim), jnp.float32)
    params = make_params(kp, dim, pool_ratios)

    out = pooling_attention_forward(x, H, W, params, num_heads, pool_ratios)
    out = jax.block_until_ready(out)
    assert out.shape == (B, N, dim), out.shape
    assert bool(jnp.all(jnp.isfinite(out)))
    print("KERNEL_OK")
</pallas_src>

<mosaic_0001>
module attributes {stable_mosaic.version = 11 : i64} {
  func.func @_ln_linear_kernel(%arg0: i32, %arg1: memref<256x32xbf16, #tpu.memory_space<vmem>>, %arg2: memref<1x32xf32, #tpu.memory_space<vmem>>, %arg3: memref<1x32xf32, #tpu.memory_space<vmem>>, %arg4: memref<32x64xbf16, #tpu.memory_space<vmem>>, %arg5: memref<256x64xbf16, #tpu.memory_space<vmem>>) attributes {dimension_semantics = [#tpu.dimension_semantics<parallel>], iteration_bounds = array<i64: 1>, scalar_prefetch = 0 : i64, scratch_operands = 0 : i64, tpu.core_type = #tpu.core_type<tc>, window_params = [{transform_indices = @transform_0, window_bounds = array<i64: 256, 32>}, {pipeline_mode = #tpu.pipeline_mode<synchronous>, transform_indices = @transform_1, window_bounds = array<i64: 1, 32>}, {pipeline_mode = #tpu.pipeline_mode<synchronous>, transform_indices = @transform_2, window_bounds = array<i64: 1, 32>}, {pipeline_mode = #tpu.pipeline_mode<synchronous>, transform_indices = @transform_3, window_bounds = array<i64: 32, 64>}, {transform_indices = @transform_4, window_bounds = array<i64: 256, 64>}]} {
    %c0 = arith.constant 0 : index
    %c0_0 = arith.constant 0 : index
    %0 = vector.load %arg1[%c0, %c0_0] : memref<256x32xbf16, #tpu.memory_space<vmem>>, vector<256x32xbf16>
    %1 = arith.extf %0 : vector<256x32xbf16> to vector<256x32xf32>
    %cst = arith.constant dense<0.000000e+00> : vector<256xf32>
    %2 = vector.multi_reduction <add>, %1, %cst [1] : vector<256x32xf32> to vector<256xf32>
    %3 = vector.shape_cast %2 : vector<256xf32> to vector<256x1xf32>
    %cst_1 = arith.constant 3.200000e+01 : f32
    %4 = vector.broadcast %cst_1 : f32 to vector<256x1xf32>
    %5 = arith.divf %3, %4 : vector<256x1xf32>
    %6 = vector.broadcast %5 : vector<256x1xf32> to vector<256x32xf32>
    %7 = arith.subf %1, %6 : vector<256x32xf32>
    %8 = arith.mulf %7, %7 : vector<256x32xf32>
    %cst_2 = arith.constant dense<0.000000e+00> : vector<256xf32>
    %9 = vector.multi_reduction <add>, %8, %cst_2 [1] : vector<256x32xf32> to vector<256xf32>
    %10 = vector.shape_cast %9 : vector<256xf32> to vector<256x1xf32>
    %cst_3 = arith.constant 3.200000e+01 : f32
    %11 = vector.broadcast %cst_3 : f32 to vector<256x1xf32>
    %12 = arith.divf %10, %11 : vector<256x1xf32>
    %13 = vector.broadcast %5 : vector<256x1xf32> to vector<256x32xf32>
    %14 = arith.subf %1, %13 : vector<256x32xf32>
    %cst_4 = arith.constant 9.99999974E-6 : f32
    %15 = vector.broadcast %cst_4 : f32 to vector<256x1xf32>
    %16 = arith.addf %12, %15 : vector<256x1xf32>
    %17 = math.rsqrt %16 : vector<256x1xf32>
    %18 = vector.broadcast %17 : vector<256x1xf32> to vector<256x32xf32>
    %19 = arith.mulf %14, %18 : vector<256x32xf32>
    %c0_5 = arith.constant 0 : index
    %c0_6 = arith.constant 0 : index
    %20 = vector.load %arg2[%c0_5, %c0_6] : memref<1x32xf32, #tpu.memory_space<vmem>>, vector<1x32xf32>
    %21 = vector.broadcast %20 : vector<1x32xf32> to vector<256x32xf32>
    %22 = arith.mulf %19, %21 : vector<256x32xf32>
    %c0_7 = arith.constant 0 : index
    %c0_8 = arith.constant 0 : index
    %23 = vector.load %arg3[%c0_7, %c0_8] : memref<1x32xf32, #tpu.memory_space<vmem>>, vector<1x32xf32>
    %24 = vector.broadcast %23 : vector<1x32xf32> to vector<256x32xf32>
    %25 = arith.addf %22, %24 : vector<256x32xf32>
    %26 = arith.truncf %25 : vector<256x32xf32> to vector<256x32xbf16>
    %c0_9 = arith.constant 0 : index
    %c0_10 = arith.constant 0 : index
    %27 = vector.load %arg4[%c0_9, %c0_10] : memref<32x64xbf16, #tpu.memory_space<vmem>>, vector<32x64xbf16>
    %cst_11 = arith.constant dense<0.000000e+00> : vector<256x64xf32>
    %28 = tpu.matmul %26, %27, %cst_11 {dimension_numbers = #tpu.dot_dimension_numbers<[1], [0], [0], [1], [0, 0, 1, 1], [], []>} : vector<256x32xbf16>, vector<32x64xbf16>, vector<256x64xf32> -> vector<256x64xf32>
    %29 = arith.truncf %28 : vector<256x64xf32> to vector<256x64xbf16>
    %c0_12 = arith.constant 0 : index
    %c0_13 = arith.constant 0 : index
    %30 = vector.load %arg5[%c0_12, %c0_13] : memref<256x64xbf16, #tpu.memory_space<vmem>>, vector<256x64xbf16>
    tpu.vector_store %arg5[%c0_12, %c0_13], %29 {strides = array<i32>} : memref<256x64xbf16, #tpu.memory_space<vmem>>, vector<256x64xbf16>,
    return
  }
  func.func @transform_0(%arg0: i32) -> (i32, i32) {
    %c0_i32 = arith.constant 0 : i32
    %c0_i32_0 = arith.constant 0 : i32
    return %arg0, %c0_i32 : i32, i32
  }
  func.func @transform_1(%arg0: i32) -> (i32, i32) {
    %c0_i32 = arith.constant 0 : i32
    %c0_i32_0 = arith.constant 0 : i32
    %c0_i32_1 = arith.constant 0 : i32
    return %c0_i32, %c0_i32_0 : i32, i32
  }
  func.func @transform_2(%arg0: i32) -> (i32, i32) {
    %c0_i32 = arith.constant 0 : i32
    %c0_i32_0 = arith.constant 0 : i32
    %c0_i32_1 = arith.constant 0 : i32
    return %c0_i32, %c0_i32_0 : i32, i32
  }
  func.func @transform_3(%arg0: i32) -> (i32, i32) {
    %c0_i32 = arith.constant 0 : i32
    %c0_i32_0 = arith.constant 0 : i32
    %c0_i32_1 = arith.constant 0 : i32
    return %c0_i32, %c0_i32_0 : i32, i32
  }
  func.func @transform_4(%arg0: i32) -> (i32, i32) {
    %c0_i32 = arith.constant 0 : i32
    %c0_i32_0 = arith.constant 0 : i32
    return %arg0, %c0_i32 : i32, i32
  }
}

</mosaic_0001>

<llo_original>
// kernel: tpu_custom_call.1
$region0: #{tpu_custom_call.1}
  #allocation0 [shape = 'u32[]', space=smem, size = 0x4, offset = 0x4, fixed_abs, tag = 'smem constant byte address 0x4 - core index']
  #allocation1 [shape = 'u32[144,128]{1,0:T(1,128)}', space=vmem, size = 0x12000, scoped, tag = 'internal scratch']
  %s0 = inlined_call_operand.vmem [shape: bf16[256,32], index: 0, kind: input, shape index: {}]
  %s1 = inlined_call_operand.vmem [shape: f32[1,32], index: 1, kind: input, shape index: {}]
  %s2 = inlined_call_operand.vmem [shape: f32[1,32], index: 2, kind: input, shape index: {}]
  %s3 = inlined_call_operand.vmem [shape: bf16[32,64], index: 3, kind: input, shape index: {}]
  %s4 = inlined_call_operand.vmem [shape: bf16[256,64], index: 4, kind: output, shape index: {}]
  %s5 = sld [smem:[#allocation0]]
  $region26: #{tpu_custom_call.1} parent=0
    _
  %s7 = ssub.s32 1, %s5
  %s8 = scalar_select 0, %s7, %s5
  // Predicated region
  $region2: #{tpu_custom_call.1} parent=0 // pred_check
    _
  $region3: #{tpu_custom_call.1} parent=0 // pred_check_branch
    %10 = sbr.rel (0) target = $region5
  $region4: #{tpu_custom_call.1} parent=0 // pred_region
    _
  $region5: #{tpu_custom_call.1} parent=0 // pred_fallthru
    _
  // Predicated region
  $region6: #{tpu_custom_call.1} parent=0 // pred_check
    _
  $region7: #{tpu_custom_call.1} parent=0 // pred_check_branch
    %12 = sbr.rel (0) target = $region9
  $region8: #{tpu_custom_call.1} parent=0 // pred_region
    _
  $region9: #{tpu_custom_call.1} parent=0 // pred_fallthru
    _
  // Predicated region
  $region10: #{tpu_custom_call.1} parent=0 // pred_check
    _
  $region11: #{tpu_custom_call.1} parent=0 // pred_check_branch
    %14 = sbr.rel (0) target = $region13
  $region12: #{tpu_custom_call.1} parent=0 // pred_region
    _
  $region13: #{tpu_custom_call.1} parent=0 // pred_fallthru
    _
  // Predicated region
  $region14: #{tpu_custom_call.1} parent=0 // pred_check
    _
  $region15: #{tpu_custom_call.1} parent=0 // pred_check_branch
    %16 = sbr.rel (0) target = $region17
  $region16: #{tpu_custom_call.1} parent=0 // pred_region
    _
  $region17: #{tpu_custom_call.1} parent=0 // pred_fallthru
    _
  %v18 = vld [vmem:[%s0] sm:$0xf]
  %v19 = vld [vmem:[%s0 + $0x4] sm:$0xf]
  %v20 = vld [vmem:[%s0 + $0x8] sm:$0xf]
  %v21 = vld [vmem:[%s0 + $0xc] sm:$0xf]
  %v22 = vld [vmem:[%s0 + $0x10] sm:$0xf]
  %v23 = vld [vmem:[%s0 + $0x14] sm:$0xf]
  %v24 = vld [vmem:[%s0 + $0x18] sm:$0xf]
  %v25 = vld [vmem:[%s0 + $0x1c] sm:$0xf]
  %v26 = vld [vmem:[%s0 + $0x20] sm:$0xf]
  %v27 = vld [vmem:[%s0 + $0x24] sm:$0xf]
  %v28 = vld [vmem:[%s0 + $0x28] sm:$0xf]
  %v29 = vld [vmem:[%s0 + $0x2c] sm:$0xf]
  %v30 = vld [vmem:[%s0 + $0x30] sm:$0xf]
  %v31 = vld [vmem:[%s0 + $0x34] sm:$0xf]
  %v32 = vld [vmem:[%s0 + $0x38] sm:$0xf]
  %v33 = vld [vmem:[%s0 + $0x3c] sm:$0xf]
  %v34 = vld [vmem:[%s0 + $0x40] sm:$0xf]
  %v35 = vld [vmem:[%s0 + $0x44] sm:$0xf]
  %v36 = vld [vmem:[%s0 + $0x48] sm:$0xf]
  %v37 = vld [vmem:[%s0 + $0x4c] sm:$0xf]
  %v38 = vld [vmem:[%s0 + $0x50] sm:$0xf]
  %v39 = vld [vmem:[%s0 + $0x54] sm:$0xf]
  %v40 = vld [vmem:[%s0 + $0x58] sm:$0xf]
  %v41 = vld [vmem:[%s0 + $0x5c] sm:$0xf]
  %v42 = vld [vmem:[%s0 + $0x60] sm:$0xf]
  %v43 = vld [vmem:[%s0 + $0x64] sm:$0xf]
  %v44 = vld [vmem:[%s0 + $0x68] sm:$0xf]
  %v45 = vld [vmem:[%s0 + $0x6c] sm:$0xf]
  %v46 = vld [vmem:[%s0 + $0x70] sm:$0xf]
  %v47 = vld [vmem:[%s0 + $0x74] sm:$0xf]
  %v48 = vld [vmem:[%s0 + $0x78] sm:$0xf]
  %v49 = vld [vmem:[%s0 + $0x7c] sm:$0xf]
  %v50 = vunpack.c.l.bf16 %v18
  %v51 = vunpack.c.l.bf16 %v19
  %v52 = vunpack.c.l.bf16 %v20
  %v53 = vunpack.c.l.bf16 %v21
  %v54 = vunpack.c.l.bf16 %v22
  %v55 = vunpack.c.l.bf16 %v23
  %v56 = vunpack.c.l.bf16 %v24
  %v57 = vunpack.c.l.bf16 %v25
  %v58 = vunpack.c.l.bf16 %v26
  %v59 = vunpack.c.l.bf16 %v27
  %v60 = vunpack.c.l.bf16 %v28
  %v61 = vunpack.c.l.bf16 %v29
  %v62 = vunpack.c.l.bf16 %v30
  %v63 = vunpack.c.l.bf16 %v31
  %v64 = vunpack.c.l.bf16 %v32
  %v65 = vunpack.c.l.bf16 %v33
  %v66 = vunpack.c.l.bf16 %v34
  %v67 = vunpack.c.l.bf16 %v35
  %v68 = vunpack.c.l.bf16 %v36
  %v69 = vunpack.c.l.bf16 %v37
  %v70 = vunpack.c.l.bf16 %v38
  %v71 = vunpack.c.l.bf16 %v39
  %v72 = vunpack.c.l.bf16 %v40
  %v73 = vunpack.c.l.bf16 %v41
  %v74 = vunpack.c.l.bf16 %v42
  %v75 = vunpack.c.l.bf16 %v43
  %v76 = vunpack.c.l.bf16 %v44
  %v77 = vunpack.c.l.bf16 %v45
  %v78 = vunpack.c.l.bf16 %v46
  %v79 = vunpack.c.l.bf16 %v47
  %v80 = vunpack.c.l.bf16 %v48
  %v81 = vunpack.c.l.bf16 %v49
  %vm82 = vcmask 261120
  %v83 = vsel %vm82, %v50, 0.0
  %84 = vadd.xlane.f32.xlu0 %v83
  %v85 = vpop.xlane.xlu0 %84
  %v86 = vsel %vm82, %v51, 0.0
  %87 = vadd.xlane.f32.xlu0 %v86
  %v88 = vpop.xlane.xlu0 %87
  %v89 = vsel %vm82, %v52, 0.0
  %90 = vadd.xlane.f32.xlu0 %v89
  %v91 = vpop.xlane.xlu0 %90
  %v92 = vsel %vm82, %v53, 0.0
  %93 = vadd.xlane.f32.xlu0 %v92
  %v94 = vpop.xlane.xlu0 %93
  %v95 = vsel %vm82, %v54, 0.0
  %96 = vadd.xlane.f32.xlu0 %v95
  %v97 = vpop.xlane.xlu0 %96
  %v98 = vsel %vm82, %v55, 0.0
  %99 = vadd.xlane.f32.xlu0 %v98
  %v100 = vpop.xlane.xlu0 %99
  %v101 = vsel %vm82, %v56, 0.0
  %102 = vadd.xlane.f32.xlu0 %v101
  %v103 = vpop.xlane.xlu0 %102
  %v104 = vsel %vm82, %v57, 0.0
  %105 = vadd.xlane.f32.xlu0 %v104
  %v106 = vpop.xlane.xlu0 %105
  %v107 = vsel %vm82, %v58, 0.0
  %108 = vadd.xlane.f32.xlu0 %v107
  %v109 = vpop.xlane.xlu0 %108
  %v110 = vsel %vm82, %v59, 0.0
  %111 = vadd.xlane.f32.xlu0 %v110
  %v112 = vpop.xlane.xlu0 %111
  %v113 = vsel %vm82, %v60, 0.0
  %114 = vadd.xlane.f32.xlu0 %v113
  %v115 = vpop.xlane.xlu0 %114
  %v116 = vsel %vm82, %v61, 0.0
  %117 = vadd.xlane.f32.xlu0 %v116
  %v118 = vpop.xlane.xlu0 %117
  %v119 = vsel %vm82, %v62, 0.0
  %120 = vadd.xlane.f32.xlu0 %v119
  %v121 = vpop.xlane.xlu0 %120
  %v122 = vsel %vm82, %v63, 0.0
  %123 = vadd.xlane.f32.xlu0 %v122
  %v124 = vpop.xlane.xlu0 %123
  %v125 = vsel %vm82, %v64, 0.0
  %126 = vadd.xlane.f32.xlu0 %v125
  %v127 = vpop.xlane.xlu0 %126
  %v128 = vsel %vm82, %v65, 0.0
  %129 = vadd.xlane.f32.xlu0 %v128
  %v130 = vpop.xlane.xlu0 %129
  %v131 = vsel %vm82, %v66, 0.0
  %132 = vadd.xlane.f32.xlu0 %v131
  %v133 = vpop.xlane.xlu0 %132
  %v134 = vsel %vm82, %v67, 0.0
  %135 = vadd.xlane.f32.xlu0 %v134
  %v136 = vpop.xlane.xlu0 %135
  %v137 = vsel %vm82, %v68, 0.0
  %138 = vadd.xlane.f32.xlu0 %v137
  %v139 = vpop.xlane.xlu0 %138
  %v140 = vsel %vm82, %v69, 0.0
  %141 = vadd.xlane.f32.xlu0 %v140
  %v142 = vpop.xlane.xlu0 %141
  %v143 = vsel %vm82, %v70, 0.0
  %144 = vadd.xlane.f32.xlu0 %v143
  %v145 = vpop.xlane.xlu0 %144
  %v146 = vsel %vm82, %v71, 0.0
  %147 = vadd.xlane.f32.xlu0 %v146
  %v148 = vpop.xlane.xlu0 %147
  %v149 = vsel %vm82, %v72, 0.0
  %150 = vadd.xlane.f32.xlu0 %v149
  %v151 = vpop.xlane.xlu0 %150
  %v152 = vsel %vm82, %v73, 0.0
  %153 = vadd.xlane.f32.xlu0 %v152
  %v154 = vpop.xlane.xlu0 %153
  %v155 = vsel %vm82, %v74, 0.0
  %156 = vadd.xlane.f32.xlu0 %v155
  %v157 = vpop.xlane.xlu0 %156
  %v158 = vsel %vm82, %v75, 0.0
  %159 = vadd.xlane.f32.xlu0 %v158
  %v160 = vpop.xlane.xlu0 %159
  %v161 = vsel %vm82, %v76, 0.0
  %162 = vadd.xlane.f32.xlu0 %v161
  %v163 = vpop.xlane.xlu0 %162
  %v164 = vsel %vm82, %v77, 0.0
  %165 = vadd.xlane.f32.xlu0 %v164
  %v166 = vpop.xlane.xlu0 %165
  %v167 = vsel %vm82, %v78, 0.0
  %168 = vadd.xlane.f32.xlu0 %v167
  %v169 = vpop.xlane.xlu0 %168
  %v170 = vsel %vm82, %v79, 0.0
  %171 = vadd.xlane.f32.xlu0 %v170
  %v172 = vpop.xlane.xlu0 %171
  %v173 = vsel %vm82, %v80, 0.0
  %174 = vadd.xlane.f32.xlu0 %v173
  %v175 = vpop.xlane.xlu0 %174
  %v176 = vsel %vm82, %v81, 0.0
  %177 = vadd.xlane.f32.xlu0 %v176
  %v178 = vpop.xlane.xlu0 %177
  %v179 = vrcp.pop 32.0
  %v180 = vmul.f32 %v85, %v179
  %v181 = vmul.f32 %v88, %v179
  %v182 = vmul.f32 %v91, %v179
  %v183 = vmul.f32 %v94, %v179
  %v184 = vmul.f32 %v97, %v179
  %v185 = vmul.f32 %v100, %v179
  %v186 = vmul.f32 %v103, %v179
  %v187 = vmul.f32 %v106, %v179
  %v188 = vmul.f32 %v109, %v179
  %v189 = vmul.f32 %v112, %v179
  %v190 = vmul.f32 %v115, %v179
  %v191 = vmul.f32 %v118, %v179
  %v192 = vmul.f32 %v121, %v179
  %v193 = vmul.f32 %v124, %v179
  %v194 = vmul.f32 %v127, %v179
  %v195 = vmul.f32 %v130, %v179
  %v196 = vmul.f32 %v133, %v179
  %v197 = vmul.f32 %v136, %v179
  %v198 = vmul.f32 %v139, %v179
  %v199 = vmul.f32 %v142, %v179
  %v200 = vmul.f32 %v145, %v179
  %v201 = vmul.f32 %v148, %v179
  %v202 = vmul.f32 %v151, %v179
  %v203 = vmul.f32 %v154, %v179
  %v204 = vmul.f32 %v157, %v179
  %v205 = vmul.f32 %v160, %v179
  %v206 = vmul.f32 %v163, %v179
  %v207 = vmul.f32 %v166, %v179
  %v208 = vmul.f32 %v169, %v179
  %v209 = vmul.f32 %v172, %v179
  %v210 = vmul.f32 %v175, %v179
  %v211 = vmul.f32 %v178, %v179
  %v212 = vsub.f32 %v50, %v180
  %v213 = vsub.f32 %v51, %v181
  %v214 = vsub.f32 %v52, %v182
  %v215 = vsub.f32 %v53, %v183
  %v216 = vsub.f32 %v54, %v184
  %v217 = vsub.f32 %v55, %v185
  %v218 = vsub.f32 %v56, %v186
  %v219 = vsub.f32 %v57, %v187
  %v220 = vsub.f32 %v58, %v188
  %v221 = vsub.f32 %v59, %v189
  %v222 = vsub.f32 %v60, %v190
  %v223 = vsub.f32 %v61, %v191
  %v224 = vsub.f32 %v62, %v192
  %v225 = vsub.f32 %v63, %v193
  %v226 = vsub.f32 %v64, %v194
  %v227 = vsub.f32 %v65, %v195
  %v228 = vsub.f32 %v66, %v196
  %v229 = vsub.f32 %v67, %v197
  %v230 = vsub.f32 %v68, %v198
  %v231 = vsub.f32 %v69, %v199
  %v232 = vsub.f32 %v70, %v200
  %v233 = vsub.f32 %v71, %v201
  %v234 = vsub.f32 %v72, %v202
  %v235 = vsub.f32 %v73, %v203
  %v236 = vsub.f32 %v74, %v204
  %v237 = vsub.f32 %v75, %v205
  %v238 = vsub.f32 %v76, %v206
  %v239 = vsub.f32 %v77, %v207
  %v240 = vsub.f32 %v78, %v208
  %v241 = vsub.f32 %v79, %v209
  %v242 = vsub.f32 %v80, %v210
  %v243 = vsub.f32 %v81, %v211
  %v244 = vmul.f32 %v212, %v212
  %v245 = vmul.f32 %v213, %v213
  %v246 = vmul.f32 %v214, %v214
  %v247 = vmul.f32 %v215, %v215
  %v248 = vmul.f32 %v216, %v216
  %v249 = vmul.f32 %v217, %v217
  %v250 = vmul.f32 %v218, %v218
  %v251 = vmul.f32 %v219, %v219
  %v252 = vmul.f32 %v220, %v220
  %v253 = vmul.f32 %v221, %v221
  %v254 = vmul.f32 %v222, %v222
  %v255 = vmul.f32 %v223, %v223
  %v256 = vmul.f32 %v224, %v224
  %v257 = vmul.f32 %v225, %v225
  %v258 = vmul.f32 %v226, %v226
  %v259 = vmul.f32 %v227, %v227
  %v260 = vmul.f32 %v228, %v228
  %v261 = vmul.f32 %v229, %v229
  %v262 = vmul.f32 %v230, %v230
  %v263 = vmul.f32 %v231, %v231
  %v264 = vmul.f32 %v232, %v232
  %v265 = vmul.f32 %v233, %v233
  %v266 = vmul.f32 %v234, %v234
  %v267 = vmul.f32 %v235, %v235
  %v268 = vmul.f32 %v236, %v236
  %v269 = vmul.f32 %v237, %v237
  %v270 = vmul.f32 %v238, %v238
  %v271 = vmul.f32 %v239, %v239
  %v272 = vmul.f32 %v240, %v240
  %v273 = vmul.f32 %v241, %v241
  %v274 = vmul.f32 %v242, %v242
  %v275 = vmul.f32 %v243, %v243
  %v276 = vsel %vm82, %v244, 0.0
  %277 = vadd.xlane.f32.xlu0 %v276
  %v278 = vpop.xlane.xlu0 %277
  %v279 = vsel %vm82, %v245, 0.0
  %280 = vadd.xlane.f32.xlu0 %v279
  %v281 = vpop.xlane.xlu0 %280
  %v282 = vsel %vm82, %v246, 0.0
  %283 = vadd.xlane.f32.xlu0 %v282
  %v284 = vpop.xlane.xlu0 %283
  %v285 = vsel %vm82, %v247, 0.0
  %286 = vadd.xlane.f32.xlu0 %v285
  %v287 = vpop.xlane.xlu0 %286
  %v288 = vsel %vm82, %v248, 0.0
  %289 = vadd.xlane.f32.xlu0 %v288
  %v290 = vpop.xlane.xlu0 %289
  %v291 = vsel %vm82, %v249, 0.0
  %292 = vadd.xlane.f32.xlu0 %v291
  %v293 = vpop.xlane.xlu0 %292
  %v294 = vsel %vm82, %v250, 0.0
  %295 = vadd.xlane.f32.xlu0 %v294
  %v296 = vpop.xlane.xlu0 %295
  %v297 = vsel %vm82, %v251, 0.0
  %298 = vadd.xlane.f32.xlu0 %v297
  %v299 = vpop.xlane.xlu0 %298
  %v300 = vsel %vm82, %v252, 0.0
  %301 = vadd.xlane.f32.xlu0 %v300
  %v302 = vpop.xlane.xlu0 %301
  %v303 = vsel %vm82, %v253, 0.0
  %304 = vadd.xlane.f32.xlu0 %v303
  %v305 = vpop.xlane.xlu0 %304
  %v306 = vsel %vm82, %v254, 0.0
  %307 = vadd.xlane.f32.xlu0 %v306
  %v308 = vpop.xlane.xlu0 %307
  %v309 = vsel %vm82, %v255, 0.0
  %310 = vadd.xlane.f32.xlu0 %v309
  %v311 = vpop.xlane.xlu0 %310
  %v312 = vsel %vm82, %v256, 0.0
  %313 = vadd.xlane.f32.xlu0 %v312
  %v314 = vpop.xlane.xlu0 %313
  %v315 = vsel %vm82, %v257, 0.0
  %316 = vadd.xlane.f32.xlu0 %v315
  %v317 = vpop.xlane.xlu0 %316
  %v318 = vsel %vm82, %v258, 0.0
  %319 = vadd.xlane.f32.xlu0 %v318
  %v320 = vpop.xlane.xlu0 %319
  %v321 = vsel %vm82, %v259, 0.0
  %322 = vadd.xlane.f32.xlu0 %v321
  %v323 = vpop.xlane.xlu0 %322
  %v324 = vsel %vm82, %v260, 0.0
  %325 = vadd.xlane.f32.xlu0 %v324
  %v326 = vpop.xlane.xlu0 %325
  %v327 = vsel %vm82, %v261, 0.0
  %328 = vadd.xlane.f32.xlu0 %v327
  %v329 = vpop.xlane.xlu0 %328
  %v330 = vsel %vm82, %v262, 0.0
  %331 = vadd.xlane.f32.xlu0 %v330
  %v332 = vpop.xlane.xlu0 %331
  %v333 = vsel %vm82, %v263, 0.0
  %334 = vadd.xlane.f32.xlu0 %v333
  %v335 = vpop.xlane.xlu0 %334
  %v336 = vsel %vm82, %v264, 0.0
  %337 = vadd.xlane.f32.xlu0 %v336
  %v338 = vpop.xlane.xlu0 %337
  %v339 = vsel %vm82, %v265, 0.0
  %340 = vadd.xlane.f32.xlu0 %v339
  %v341 = vpop.xlane.xlu0 %340
  %v342 = vsel %vm82, %v266, 0.0
  %343 = vadd.xlane.f32.xlu0 %v342
  %v344 = vpop.xlane.xlu0 %343
  %v345 = vsel %vm82, %v267, 0.0
  %346 = vadd.xlane.f32.xlu0 %v345
  %v347 = vpop.xlane.xlu0 %346
  %v348 = vsel %vm82, %v268, 0.0
  %349 = vadd.xlane.f32.xlu0 %v348
  %v350 = vpop.xlane.xlu0 %349
  %v351 = vsel %vm82, %v269, 0.0
  %352 = vadd.xlane.f32.xlu0 %v351
  %v353 = vpop.xlane.xlu0 %352
  %v354 = vsel %vm82, %v270, 0.0
  %355 = vadd.xlane.f32.xlu0 %v354
  %v356 = vpop.xlane.xlu0 %355
  %v357 = vsel %vm82, %v271, 0.0
  %358 = vadd.xlane.f32.xlu0 %v357
  %v359 = vpop.xlane.xlu0 %358
  %v360 = vsel %vm82, %v272, 0.0
  %361 = vadd.xlane.f32.xlu0 %v360
  %v362 = vpop.xlane.xlu0 %361
  %v363 = vsel %vm82, %v273, 0.0
  %364 = vadd.xlane.f32.xlu0 %v363
  %v365 = vpop.xlane.xlu0 %364
  %v366 = vsel %vm82, %v274, 0.0
  %367 = vadd.xlane.f32.xlu0 %v366
  %v368 = vpop.xlane.xlu0 %367
  %v369 = vsel %vm82, %v275, 0.0
  %370 = vadd.xlane.f32.xlu0 %v369
  %v371 = vpop.xlane.xlu0 %370
  %v372 = vmul.f32 %v278, %v179
  %v373 = vmul.f32 %v281, %v179
  %v374 = vmul.f32 %v284, %v179
  %v375 = vmul.f32 %v287, %v179
  %v376 = vmul.f32 %v290, %v179
  %v377 = vmul.f32 %v293, %v179
  %v378 = vmul.f32 %v296, %v179
  %v379 = vmul.f32 %v299, %v179
  %v380 = vmul.f32 %v302, %v179
  %v381 = vmul.f32 %v305, %v179
  %v382 = vmul.f32 %v308, %v179
  %v383 = vmul.f32 %v311, %v179
  %v384 = vmul.f32 %v314, %v179
  %v385 = vmul.f32 %v317, %v179
  %v386 = vmul.f32 %v320, %v179
  %v387 = vmul.f32 %v323, %v179
  %v388 = vmul.f32 %v326, %v179
  %v389 = vmul.f32 %v329, %v179
  %v390 = vmul.f32 %v332, %v179
  %v391 = vmul.f32 %v335, %v179
  %v392 = vmul.f32 %v338, %v179
  %v393 = vmul.f32 %v341, %v179
  %v394 = vmul.f32 %v344, %v179
  %v395 = vmul.f32 %v347, %v179
  %v396 = vmul.f32 %v350, %v179
  %v397 = vmul.f32 %v353, %v179
  %v398 = vmul.f32 %v356, %v179
  %v399 = vmul.f32 %v359, %v179
  %v400 = vmul.f32 %v362, %v179
  %v401 = vmul.f32 %v365, %v179
  %v402 = vmul.f32 %v368, %v179
  %v403 = vmul.f32 %v371, %v179
  %v404 = vadd.f32 %v372, 1e-05
  %v405 = vadd.f32 %v373, 1e-05
  %v406 = vadd.f32 %v374, 1e-05
  %v407 = vadd.f32 %v375, 1e-05
  %v408 = vadd.f32 %v376, 1e-05
  %v409 = vadd.f32 %v377, 1e-05
  %v410 = vadd.f32 %v378, 1e-05
  %v411 = vadd.f32 %v379, 1e-05
  %v412 = vadd.f32 %v380, 1e-05
  %v413 = vadd.f32 %v381, 1e-05
  %v414 = vadd.f32 %v382, 1e-05
  %v415 = vadd.f32 %v383, 1e-05
  %v416 = vadd.f32 %v384, 1e-05
  %v417 = vadd.f32 %v385, 1e-05
  %v418 = vadd.f32 %v386, 1e-05
  %v419 = vadd.f32 %v387, 1e-05
  %v420 = vadd.f32 %v388, 1e-05
  %v421 = vadd.f32 %v389, 1e-05
  %v422 = vadd.f32 %v390, 1e-05
  %v423 = vadd.f32 %v391, 1e-05
  %v424 = vadd.f32 %v392, 1e-05
  %v425 = vadd.f32 %v393, 1e-05
  %v426 = vadd.f32 %v394, 1e-05
  %v427 = vadd.f32 %v395, 1e-05
  %v428 = vadd.f32 %v396, 1e-05
  %v429 = vadd.f32 %v397, 1e-05
  %v430 = vadd.f32 %v398, 1e-05
  %v431 = vadd.f32 %v399, 1e-05
  %v432 = vadd.f32 %v400, 1e-05
  %v433 = vadd.f32 %v401, 1e-05
  %v434 = vadd.f32 %v402, 1e-05
  %v435 = vadd.f32 %v403, 1e-05
  %v436 = vrsqrt.pop %v404
  %v437 = vrsqrt.pop %v405
  %v438 = vrsqrt.pop %v406
  %v439 = vrsqrt.pop %v407
  %v440 = vrsqrt.pop %v408
  %v441 = vrsqrt.pop %v409
  %v442 = vrsqrt.pop %v410
  %v443 = vrsqrt.pop %v411
  %v444 = vrsqrt.pop %v412
  %v445 = vrsqrt.pop %v413
  %v446 = vrsqrt.pop %v414
  %v447 = vrsqrt.pop %v415
  %v448 = vrsqrt.pop %v416
  %v449 = vrsqrt.pop %v417
  %v450 = vrsqrt.pop %v418
  %v451 = vrsqrt.pop %v419
  %v452 = vrsqrt.pop %v420
  %v453 = vrsqrt.pop %v421
  %v454 = vrsqrt.pop %v422
  %v455 = vrsqrt.pop %v423
  %v456 = vrsqrt.pop %v424
  %v457 = vrsqrt.pop %v425
  %v458 = vrsqrt.pop %v426
  %v459 = vrsqrt.pop %v427
  %v460 = vrsqrt.pop %v428
  %v461 = vrsqrt.pop %v429
  %v462 = vrsqrt.pop %v430
  %v463 = vrsqrt.pop %v431
  %v464 = vrsqrt.pop %v432
  %v465 = vrsqrt.pop %v433
  %v466 = vrsqrt.pop %v434
  %v467 = vrsqrt.pop %v435
  %v468 = vmul.f32 %v212, %v436
  %v469 = vmul.f32 %v213, %v437
  %v470 = vmul.f32 %v214, %v438
  %v471 = vmul.f32 %v215, %v439
  %v472 = vmul.f32 %v216, %v440
  %v473 = vmul.f32 %v217, %v441
  %v474 = vmul.f32 %v218, %v442
  %v475 = vmul.f32 %v219, %v443
  %v476 = vmul.f32 %v220, %v444
  %v477 = vmul.f32 %v221, %v445
  %v478 = vmul.f32 %v222, %v446
  %v479 = vmul.f32 %v223, %v447
  %v480 = vmul.f32 %v224, %v448
  %v481 = vmul.f32 %v225, %v449
  %v482 = vmul.f32 %v226, %v450
  %v483 = vmul.f32 %v227, %v451
  %v484 = vmul.f32 %v228, %v452
  %v485 = vmul.f32 %v229, %v453
  %v486 = vmul.f32 %v230, %v454
  %v487 = vmul.f32 %v231, %v455
  %v488 = vmul.f32 %v232, %v456
  %v489 = vmul.f32 %v233, %v457
  %v490 = vmul.f32 %v234, %v458
  %v491 = vmul.f32 %v235, %v459
  %v492 = vmul.f32 %v236, %v460
  %v493 = vmul.f32 %v237, %v461
  %v494 = vmul.f32 %v238, %v462
  %v495 = vmul.f32 %v239, %v463
  %v496 = vmul.f32 %v240, %v464
  %v497 = vmul.f32 %v241, %v465
  %v498 = vmul.f32 %v242, %v466
  %v499 = vmul.f32 %v243, %v467
  %v500 = vld [vmem:[%s1] sm:$0x1]
  %v502 = vlaneseq
  %v503 = vshrl.u32 %v502, 7
  %v504 = vsub.s32 0, %v503
  %v505 = vrot.slane %v500, %v504
  %v507 = vmul.f32 %v468, %v505
  %v508 = vmul.f32 %v469, %v505
  %v509 = vmul.f32 %v470, %v505
  %v510 = vmul.f32 %v471, %v505
  %v511 = vmul.f32 %v472, %v505
  %v512 = vmul.f32 %v473, %v505
  %v513 = vmul.f32 %v474, %v505
  %v514 = vmul.f32 %v475, %v505
  %v515 = vmul.f32 %v476, %v505
  %v516 = vmul.f32 %v477, %v505
  %v517 = vmul.f32 %v478, %v505
  %v518 = vmul.f32 %v479, %v505
  %v519 = vmul.f32 %v480, %v505
  %v520 = vmul.f32 %v481, %v505
  %v521 = vmul.f32 %v482, %v505
  %v522 = vmul.f32 %v483, %v505
  %v523 = vmul.f32 %v484, %v505
  %v524 = vmul.f32 %v485, %v505
  %v525 = vmul.f32 %v486, %v505
  %v526 = vmul.f32 %v487, %v505
  %v527 = vmul.f32 %v488, %v505
  %v528 = vmul.f32 %v489, %v505
  %v529 = vmul.f32 %v490, %v505
  %v530 = vmul.f32 %v491, %v505
  %v531 = vmul.f32 %v492, %v505
  %v532 = vmul.f32 %v493, %v505
  %v533 = vmul.f32 %v494, %v505
  %v534 = vmul.f32 %v495, %v505
  %v535 = vmul.f32 %v496, %v505
  %v536 = vmul.f32 %v497, %v505
  %v537 = vmul.f32 %v498, %v505
  %v538 = vmul.f32 %v499, %v505
  %v539 = vld [vmem:[%s2] sm:$0x1]
  %v541 = vlaneseq
  %v542 = vshrl.u32 %v541, 7
  %v543 = vsub.s32 0, %v542
  %v544 = vrot.slane %v539, %v543
  %v546 = vadd.f32 %v507, %v544
  %v547 = vadd.f32 %v508, %v544
  %v548 = vadd.f32 %v509, %v544
  %v549 = vadd.f32 %v510, %v544
  %v550 = vadd.f32 %v511, %v544
  %v551 = vadd.f32 %v512, %v544
  %v552 = vadd.f32 %v513, %v544
  %v553 = vadd.f32 %v514, %v544
  %v554 = vadd.f32 %v515, %v544
  %v555 = vadd.f32 %v516, %v544
  %v556 = vadd.f32 %v517, %v544
  %v557 = vadd.f32 %v518, %v544
  %v558 = vadd.f32 %v519, %v544
  %v559 = vadd.f32 %v520, %v544
  %v560 = vadd.f32 %v521, %v544
  %v561 = vadd.f32 %v522, %v544
  %v562 = vadd.f32 %v523, %v544
  %v563 = vadd.f32 %v524, %v544
  %v564 = vadd.f32 %v525, %v544
  %v565 = vadd.f32 %v526, %v544
  %v566 = vadd.f32 %v527, %v544
  %v567 = vadd.f32 %v528, %v544
  %v568 = vadd.f32 %v529, %v544
  %v569 = vadd.f32 %v530, %v544
  %v570 = vadd.f32 %v531, %v544
  %v571 = vadd.f32 %v532, %v544
  %v572 = vadd.f32 %v533, %v544
  %v573 = vadd.f32 %v534, %v544
  %v574 = vadd.f32 %v535, %v544
  %v575 = vadd.f32 %v536, %v544
  %v576 = vadd.f32 %v537, %v544
  %v577 = vadd.f32 %v538, %v544
  %v578 = vpack.c.bf16 %v547, %v546
  %v579 = vpack.c.bf16 %v549, %v548
  %v580 = vpack.c.bf16 %v551, %v550
  %v581 = vpack.c.bf16 %v553, %v552
  %v582 = vpack.c.bf16 %v555, %v554
  %v583 = vpack.c.bf16 %v557, %v556
  %v584 = vpack.c.bf16 %v559, %v558
  %v585 = vpack.c.bf16 %v561, %v560
  %v586 = vpack.c.bf16 %v563, %v562
  %v587 = vpack.c.bf16 %v565, %v564
  %v588 = vpack.c.bf16 %v567, %v566
  %v589 = vpack.c.bf16 %v569, %v568
  %v590 = vpack.c.bf16 %v571, %v570
  %v591 = vpack.c.bf16 %v573, %v572
  %v592 = vpack.c.bf16 %v575, %v574
  %v593 = vpack.c.bf16 %v577, %v576
  %v594 = vld [vmem:[%s3] sm:$0xf]
  %v595 = vld [vmem:[%s3 + $0x4] sm:$0xf]
  %v596 = vld [vmem:[%s3 + $0x8] sm:$0xf]
  %v597 = vld [vmem:[%s3 + $0xc] sm:$0xf]
  %v602 = vunpack.c.l.b16 %v594
  %v603 = vunpack.c.l.b16 %v595
  %v604 = vunpack.c.l.b16 %v596
  %v605 = vunpack.c.l.b16 %v597
  %v606 = vpack.c.b16 %v603, %v602
  %v607 = vpack.c.b16 %v605, %v604
  %v611 = vsel %vm82, %v578, 0
  %v614 = vsel %vm82, %v579, 0
  %v617 = vsel %vm82, %v580, 0
  %v620 = vsel %vm82, %v581, 0
  %v623 = vsel %vm82, %v582, 0
  %v626 = vsel %vm82, %v583, 0
  %v629 = vsel %vm82, %v584, 0
  %v632 = vsel %vm82, %v585, 0
  %v635 = vsel %vm82, %v586, 0
  %v638 = vsel %vm82, %v587, 0
  %v641 = vsel %vm82, %v588, 0
  %v644 = vsel %vm82, %v589, 0
  %v647 = vsel %vm82, %v590, 0
  %v650 = vsel %vm82, %v591, 0
  %v653 = vsel %vm82, %v592, 0
  %v656 = vsel %vm82, %v593, 0
  %658 = vmatprep.subr.bf16.mxu0 0
  %659 = vmatpush1.bf16.msra.mxu0 0
  %660 = vmatprep.subr.bf16.mxu0 0
  %661 = vmatpush1.bf16.msra.mxu0 0
  %662 = vmatprep.subr.bf16.mxu0 0
  %663 = vmatpush1.bf16.msra.mxu0 0
  %664 = vmatprep.subr.bf16.mxu0 0
  %665 = vmatpush1.bf16.msra.mxu0 0
  %666 = vmatprep.subr.bf16.mxu0 0
  %667 = vmatpush1.bf16.msra.mxu0 0
  %668 = vmatprep.subr.bf16.mxu0 0
  %669 = vmatpush1.bf16.msra.mxu0 0
  %670 = vmatprep.subr.bf16.mxu0 0
  %671 = vmatpush1.bf16.msra.mxu0 %v607
  %672 = vmatprep.subr.bf16.mxu0 0
  %673 = vmatpush1.bf16.msra.mxu0 %v606
  %674 = vmatprep.subr.bf16.mxu0 0
  %675 = vmatpush2.bf16.msra.mxu0 0
  %676 = vmatprep.subr.bf16.mxu0 0
  %677 = vmatpush2.bf16.msra.mxu0 0
  %678 = vmatprep.subr.bf16.mxu0 0
  %679 = vmatpush2.bf16.msra.mxu0 0
  %680 = vmatprep.subr.bf16.mxu0 0
  %681 = vmatpush2.bf16.msra.mxu0 0
  %682 = vmatprep.subr.bf16.mxu0 0
  %683 = vmatpush2.bf16.msra.mxu0 0
  %684 = vmatprep.subr.bf16.mxu0 0
  %685 = vmatpush2.bf16.msra.mxu0 0
  %686 = vmatprep.subr.bf16.mxu0 0
  %687 = vmatpush2.bf16.msra.mxu0 0
  %688 = vmatprep.subr.bf16.mxu0 0
  %689 = vmatpush2.bf16.msra.mxu0 0
  %690 = vmatprep.mubr.bf16.mxu0 0
  %691 = vmatmul.mubr.bf16.gmra.mxu0 %v611
  %v692 = vpop.f32.mrf.mxu0
  %v693 = vadd.f32 0.0, %v692
  %v694 = vpop.f32.mrf.mxu0
  %v695 = vpop.f32.mrf.mxu0
  %v696 = vadd.f32 0.0, %v695
  %v697 = vpop.f32.mrf.mxu0
  %698 = vmatprep.mubr.bf16.mxu0 0
  %699 = vmatmul.mubr.bf16.gmra.mxu0 %v614
  %v700 = vpop.f32.mrf.mxu0
  %v701 = vadd.f32 0.0, %v700
  %v702 = vpop.f32.mrf.mxu0
  %v703 = vpop.f32.mrf.mxu0
  %v704 = vadd.f32 0.0, %v703
  %v705 = vpop.f32.mrf.mxu0
  %706 = vmatprep.mubr.bf16.mxu0 0
  %707 = vmatmul.mubr.bf16.gmra.mxu0 %v617
  %v708 = vpop.f32.mrf.mxu0
  %v709 = vadd.f32 0.0, %v708
  %v710 = vpop.f32.mrf.mxu0
  %v711 = vpop.f32.mrf.mxu0
  %v712 = vadd.f32 0.0, %v711
  %v713 = vpop.f32.mrf.mxu0
  %714 = vmatprep.mubr.bf16.mxu0 0
  %715 = vmatmul.mubr.bf16.gmra.mxu0 %v620
  %v716 = vpop.f32.mrf.mxu0
  %v717 = vadd.f32 0.0, %v716
  %v718 = vpop.f32.mrf.mxu0
  %v719 = vpop.f32.mrf.mxu0
  %v720 = vadd.f32 0.0, %v719
  %v721 = vpop.f32.mrf.mxu0
  %722 = vmatprep.mubr.bf16.mxu0 0
  %723 = vmatmul.mubr.bf16.gmra.mxu0 %v623
  %v724 = vpop.f32.mrf.mxu0
  %v725 = vadd.f32 0.0, %v724
  %v726 = vpop.f32.mrf.mxu0
  %v727 = vpop.f32.mrf.mxu0
  %v728 = vadd.f32 0.0, %v727
  %v729 = vpop.f32.mrf.mxu0
  %730 = vmatprep.mubr.bf16.mxu0 0
  %731 = vmatmul.mubr.bf16.gmra.mxu0 %v626
  %v732 = vpop.f32.mrf.mxu0
  %v733 = vadd.f32 0.0, %v732
  %v734 = vpop.f32.mrf.mxu0
  %v735 = vpop.f32.mrf.mxu0
  %v736 = vadd.f32 0.0, %v735
  %v737 = vpop.f32.mrf.mxu0
  %738 = vmatprep.mubr.bf16.mxu0 0
  %739 = vmatmul.mubr.bf16.gmra.mxu0 %v629
  %v740 = vpop.f32.mrf.mxu0
  %v741 = vadd.f32 0.0, %v740
  %v742 = vpop.f32.mrf.mxu0
  %v743 = vpop.f32.mrf.mxu0
  %v744 = vadd.f32 0.0, %v743
  %v745 = vpop.f32.mrf.mxu0
  %746 = vmatprep.mubr.bf16.mxu0 0
  %747 = vmatmul.mubr.bf16.gmra.mxu0 %v632
  %v748 = vpop.f32.mrf.mxu0
  %v749 = vadd.f32 0.0, %v748
  %v750 = vpop.f32.mrf.mxu0
  %v751 = vpop.f32.mrf.mxu0
  %v752 = vadd.f32 0.0, %v751
  %v753 = vpop.f32.mrf.mxu0
  %754 = vmatprep.mubr.bf16.mxu0 0
  %755 = vmatmul.mubr.bf16.gmra.mxu0 %v635
  %v756 = vpop.f32.mrf.mxu0
  %v757 = vadd.f32 0.0, %v756
  %v758 = vpop.f32.mrf.mxu0
  %v759 = vpop.f32.mrf.mxu0
  %v760 = vadd.f32 0.0, %v759
  %v761 = vpop.f32.mrf.mxu0
  %762 = vmatprep.mubr.bf16.mxu0 0
  %763 = vmatmul.mubr.bf16.gmra.mxu0 %v638
  %v764 = vpop.f32.mrf.mxu0
  %v765 = vadd.f32 0.0, %v764
  %v766 = vpop.f32.mrf.mxu0
  %v767 = vpop.f32.mrf.mxu0
  %v768 = vadd.f32 0.0, %v767
  %v769 = vpop.f32.mrf.mxu0
  %770 = vmatprep.mubr.bf16.mxu0 0
  %771 = vmatmul.mubr.bf16.gmra.mxu0 %v641
  %v772 = vpop.f32.mrf.mxu0
  %v773 = vadd.f32 0.0, %v772
  %v774 = vpop.f32.mrf.mxu0
  %v775 = vpop.f32.mrf.mxu0
  %v776 = vadd.f32 0.0, %v775
  %v777 = vpop.f32.mrf.mxu0
  %778 = vmatprep.mubr.bf16.mxu0 0
  %779 = vmatmul.mubr.bf16.gmra.mxu0 %v644
  %v780 = vpop.f32.mrf.mxu0
  %v781 = vadd.f32 0.0, %v780
  %v782 = vpop.f32.mrf.mxu0
  %v783 = vpop.f32.mrf.mxu0
  %v784 = vadd.f32 0.0, %v783
  %v785 = vpop.f32.mrf.mxu0
  %786 = vmatprep.mubr.bf16.mxu0 0
  %787 = vmatmul.mubr.bf16.gmra.mxu0 %v647
  %v788 = vpop.f32.mrf.mxu0
  %v789 = vadd.f32 0.0, %v788
  %v790 = vpop.f32.mrf.mxu0
  %v791 = vpop.f32.mrf.mxu0
  %v792 = vadd.f32 0.0, %v791
  %v793 = vpop.f32.mrf.mxu0
  %794 = vmatprep.mubr.bf16.mxu0 0
  %795 = vmatmul.mubr.bf16.gmra.mxu0 %v650
  %v796 = vpop.f32.mrf.mxu0
  %v797 = vadd.f32 0.0, %v796
  %v798 = vpop.f32.mrf.mxu0
  %v799 = vpop.f32.mrf.mxu0
  %v800 = vadd.f32 0.0, %v799
  %v801 = vpop.f32.mrf.mxu0
  %802 = vmatprep.mubr.bf16.mxu0 0
  %803 = vmatmul.mubr.bf16.gmra.mxu0 %v653
  %v804 = vpop.f32.mrf.mxu0
  %v805 = vadd.f32 0.0, %v804
  %v806 = vpop.f32.mrf.mxu0
  %v807 = vpop.f32.mrf.mxu0
  %v808 = vadd.f32 0.0, %v807
  %v809 = vpop.f32.mrf.mxu0
  %810 = vmatprep.mubr.bf16.mxu0 0
  %811 = vmatmul.mubr.bf16.gmra.mxu0 %v656
  %v812 = vpop.f32.mrf.mxu0
  %v813 = vadd.f32 0.0, %v812
  %v814 = vpop.f32.mrf.mxu0
  %v815 = vpop.f32.mrf.mxu0
  %v816 = vadd.f32 0.0, %v815
  %v817 = vpop.f32.mrf.mxu0
  %818 = vdwg.mxu0
  %v819 = vpack.c.bf16 %v696, %v693
  %v820 = vpack.c.bf16 %v704, %v701
  %v821 = vpack.c.bf16 %v712, %v709
  %v822 = vpack.c.bf16 %v720, %v717
  %v823 = vpack.c.bf16 %v728, %v725
  %v824 = vpack.c.bf16 %v736, %v733
  %v825 = vpack.c.bf16 %v744, %v741
  %v826 = vpack.c.bf16 %v752, %v749
  %v827 = vpack.c.bf16 %v760, %v757
  %v828 = vpack.c.bf16 %v768, %v765
  %v829 = vpack.c.bf16 %v776, %v773
  %v830 = vpack.c.bf16 %v784, %v781
  %v831 = vpack.c.bf16 %v792, %v789
  %v832 = vpack.c.bf16 %v800, %v797
  %v833 = vpack.c.bf16 %v808, %v805
  %v834 = vpack.c.bf16 %v816, %v813
  %v851 = vunpack.c.l.b16 %v819
  %v852 = vunpack.c.h.b16 %v819
  %v853 = vunpack.c.l.b16 %v820
  %v854 = vunpack.c.h.b16 %v820
  %v855 = vunpack.c.l.b16 %v821
  %v856 = vunpack.c.h.b16 %v821
  %v857 = vunpack.c.l.b16 %v822
  %v858 = vunpack.c.h.b16 %v822
  %v859 = vunpack.c.l.b16 %v823
  %v860 = vunpack.c.h.b16 %v823
  %v861 = vunpack.c.l.b16 %v824
  %v862 = vunpack.c.h.b16 %v824
  %v863 = vunpack.c.l.b16 %v825
  %v864 = vunpack.c.h.b16 %v825
  %v865 = vunpack.c.l.b16 %v826
  %v866 = vunpack.c.h.b16 %v826
  %v867 = vunpack.c.l.b16 %v827
  %v868 = vunpack.c.h.b16 %v827
  %v869 = vunpack.c.l.b16 %v828
  %v870 = vunpack.c.h.b16 %v828
  %v871 = vunpack.c.l.b16 %v829
  %v872 = vunpack.c.h.b16 %v829
  %v873 = vunpack.c.l.b16 %v830
  %v874 = vunpack.c.h.b16 %v830
  %v875 = vunpack.c.l.b16 %v831
  %v876 = vunpack.c.h.b16 %v831
  %v877 = vunpack.c.l.b16 %v832
  %v878 = vunpack.c.h.b16 %v832
  %v879 = vunpack.c.l.b16 %v833
  %v880 = vunpack.c.h.b16 %v833
  %v881 = vunpack.c.l.b16 %v834
  %v882 = vunpack.c.h.b16 %v834
  %v883 = vpack.c.b16 %v851, %v851
  %v884 = vpack.c.b16 %v852, %v852
  %v885 = vpack.c.b16 %v853, %v853
  %v886 = vpack.c.b16 %v854, %v854
  %v887 = vpack.c.b16 %v855, %v855
  %v888 = vpack.c.b16 %v856, %v856
  %v889 = vpack.c.b16 %v857, %v857
  %v890 = vpack.c.b16 %v858, %v858
  %v891 = vpack.c.b16 %v859, %v859
  %v892 = vpack.c.b16 %v860, %v860
  %v893 = vpack.c.b16 %v861, %v861
  %v894 = vpack.c.b16 %v862, %v862
  %v895 = vpack.c.b16 %v863, %v863
  %v896 = vpack.c.b16 %v864, %v864
  %v897 = vpack.c.b16 %v865, %v865
  %v898 = vpack.c.b16 %v866, %v866
  %v899 = vpack.c.b16 %v867, %v867
  %v900 = vpack.c.b16 %v868, %v868
  %v901 = vpack.c.b16 %v869, %v869
  %v902 = vpack.c.b16 %v870, %v870
  %v903 = vpack.c.b16 %v871, %v871
  %v904 = vpack.c.b16 %v872, %v872
  %v905 = vpack.c.b16 %v873, %v873
  %v906 = vpack.c.b16 %v874, %v874
  %v907 = vpack.c.b16 %v875, %v875
  %v908 = vpack.c.b16 %v876, %v876
  %v909 = vpack.c.b16 %v877, %v877
  %v910 = vpack.c.b16 %v878, %v878
  %v911 = vpack.c.b16 %v879, %v879
  %v912 = vpack.c.b16 %v880, %v880
  %v913 = vpack.c.b16 %v881, %v881
  %v914 = vpack.c.b16 %v882, %v882
  %vm947 = vcmask 519168
  %948 = vst.msk [vmem:[%s4] sm:$0xf] %vm947, %v883
  %949 = vst.msk [vmem:[%s4 + $0x4] sm:$0xf] %vm947, %v884
  %950 = vst.msk [vmem:[%s4 + $0x8] sm:$0xf] %vm947, %v885
  %951 = vst.msk [vmem:[%s4 + $0xc] sm:$0xf] %vm947, %v886
  %952 = vst.msk [vmem:[%s4 + $0x10] sm:$0xf] %vm947, %v887
  %953 = vst.msk [vmem:[%s4 + $0x14] sm:$0xf] %vm947, %v888
  %954 = vst.msk [vmem:[%s4 + $0x18] sm:$0xf] %vm947, %v889
  %955 = vst.msk [vmem:[%s4 + $0x1c] sm:$0xf] %vm947, %v890
  %956 = vst.msk [vmem:[%s4 + $0x20] sm:$0xf] %vm947, %v891
  %957 = vst.msk [vmem:[%s4 + $0x24] sm:$0xf] %vm947, %v892
  %958 = vst.msk [vmem:[%s4 + $0x28] sm:$0xf] %vm947, %v893
  %959 = vst.msk [vmem:[%s4 + $0x2c] sm:$0xf] %vm947, %v894
  %960 = vst.msk [vmem:[%s4 + $0x30] sm:$0xf] %vm947, %v895
  %961 = vst.msk [vmem:[%s4 + $0x34] sm:$0xf] %vm947, %v896
  %962 = vst.msk [vmem:[%s4 + $0x38] sm:$0xf] %vm947, %v897
  %963 = vst.msk [vmem:[%s4 + $0x3c] sm:$0xf] %vm947, %v898
  %964 = vst.msk [vmem:[%s4 + $0x40] sm:$0xf] %vm947, %v899
  %965 = vst.msk [vmem:[%s4 + $0x44] sm:$0xf] %vm947, %v900
  %966 = vst.msk [vmem:[%s4 + $0x48] sm:$0xf] %vm947, %v901
  %967 = vst.msk [vmem:[%s4 + $0x4c] sm:$0xf] %vm947, %v902
  %968 = vst.msk [vmem:[%s4 + $0x50] sm:$0xf] %vm947, %v903
  %969 = vst.msk [vmem:[%s4 + $0x54] sm:$0xf] %vm947, %v904
  %970 = vst.msk [vmem:[%s4 + $0x58] sm:$0xf] %vm947, %v905
  %971 = vst.msk [vmem:[%s4 + $0x5c] sm:$0xf] %vm947, %v906
  %972 = vst.msk [vmem:[%s4 + $0x60] sm:$0xf] %vm947, %v907
  %973 = vst.msk [vmem:[%s4 + $0x64] sm:$0xf] %vm947, %v908
  %974 = vst.msk [vmem:[%s4 + $0x68] sm:$0xf] %vm947, %v909
  %975 = vst.msk [vmem:[%s4 + $0x6c] sm:$0xf] %vm947, %v910
  %976 = vst.msk [vmem:[%s4 + $0x70] sm:$0xf] %vm947, %v911
  %977 = vst.msk [vmem:[%s4 + $0x74] sm:$0xf] %vm947, %v912
  %978 = vst.msk [vmem:[%s4 + $0x78] sm:$0xf] %vm947, %v913
  %979 = vst.msk [vmem:[%s4 + $0x7c] sm:$0xf] %vm947, %v914
  // Predicated region
  $region18: #{tpu_custom_call.1} parent=0 // pred_check
    _
  $region19: #{tpu_custom_call.1} parent=0 // pred_check_branch
    %981 = sbr.rel (0) target = $region21
  $region20: #{tpu_custom_call.1} parent=0 // pred_region
    _
  $region21: #{tpu_custom_call.1} parent=0 // pred_fallthru
    _
  // Predicated region
  $region22: #{tpu_custom_call.1} parent=0 // pred_check
    _
  $region23: #{tpu_custom_call.1} parent=0 // pred_check_branch
    %983 = sbr.rel (0) target = $region25
  $region24: #{tpu_custom_call.1} parent=0 // pred_region
    _
  $region25: #{tpu_custom_call.1} parent=0 // pred_fallthru
    _

</llo_original>
